<compile_context>
chip_gen: v5e
topology: v5e:2x2
jax: 0.10.0
libtpu: 0.0.40
codegen_flags: <defaults>
</compile_context>

<pallas_src>
import functools
import numpy as np
import jax
import jax.numpy as jnp
from jax.experimental import pallas as pl
from jax.experimental.pallas import tpu as pltpu

# ----- constants (these globals are undefined in the reference; chosen small & consistent) -----
K = 8                        # number of particles
n_obj = 4                    # number of objects
dim_obj = 4                  # per-object state dim
dim_state = n_obj * dim_obj  # 16 (matches ".view(B, 16)" in forward)
dim_hidden = 32
b_num_layers = 2             # kernel below is specialized to 2 GRU layers
GRU_IN = 16
ALPHA = 0.8
IN_CHANNELS = 3

SLAB_LANES = 128             # lane-dense output / weight-slab width
_H_OFF = 32                  # output cols [32, 96): h0 | h1 (first B rows)
assert b_num_layers == 2
assert _H_OFF + b_num_layers * dim_hidden <= SLAB_LANES

VMEM_SPEC = pl.BlockSpec(memory_space=pltpu.MemorySpace.VMEM)


# ----------------------------- packed weight-slab layout (static) -----------------------------
def _round8(n):
    return ((n + 7) // 8) * 8


_WBLOCK_DIMS = {
    # fused GRU layer 0: rows = [x(16) | h0(32)], cols = [r | z | n] (n-gate hidden cols zeroed)
    "w0":    (GRU_IN + dim_hidden, 3 * dim_hidden),        # 48 x 96
    "whh0n": (dim_hidden, dim_hidden),                     # 32 x 32   n-gate hidden weight
    # fused GRU layer 1: rows = [h0_new(32) | h1(32)]
    "w1":    (2 * dim_hidden, 3 * dim_hidden),             # 64 x 96
    "whh1n": (dim_hidden, dim_hidden),                     # 32 x 32
    # merged x-projection: cols = [gen W1 x-block | disc W1 x-block]
    "wx":    (dim_state, 2 * dim_hidden),                  # 16 x 64
    # generator W1 h-block
    "wh1g":  (dim_hidden, dim_hidden),                     # 32 x 32
    # block-diag per-particle projection: rows = [noise(4) | pprev(16)], cols = [gen hid | disc hid]
    "wnp":   (4 + dim_state, 2 * dim_hidden),              # 20 x 64
    # block-diag output heads: rows = [gen hid | disc hid], cols = [p_n(16) | logit(1)]
    "wfin":  (2 * dim_hidden, dim_state + 1),              # 64 x 17
    # biases
    "bg0":   (4, dim_hidden),                              # rows: (br, bz, bih_n, bhh_n)
    "bg1":   (4, dim_hidden),
    "bgd1":  (1, 2 * dim_hidden),                          # [gen_b1 | disc_b1]
    "bfin":  (1, dim_state + 1),                           # [gen_b2 | disc_b2]
}
_WOFF = {}
_off = 0
for _name, (_r, _c) in _WBLOCK_DIMS.items():
    _WOFF[_name] = _off
    _off += _round8(_r)
W_SLAB_ROWS = _off                                         # 344 rows -> ~176 KiB f32


# ----------------------------- fused per-step Pallas kernel -----------------------------
def _dpf_step_kernel(x_ref, h_ref, noise_ref, pprev_ref, w_ref, out_ref):
    f32 = jnp.float32
    H = dim_hidden
    x = x_ref[...]                     # [B, 16]
    B = x.shape[0]
    rows = B * K

    def W(name):                       # zero-cost static slice of the packed weight slab
        r0 = _WOFF[name]
        nr, nc = _WBLOCK_DIMS[name]
        return w_ref[r0:r0 + nr, 0:nc]

    def dot(a, b):
        return jnp.dot(a, b, preferred_element_type=f32)

    # ---- fused GRU cell: one [B, in+H]x[in+H, 3H] dot + one [B, H]x[H, H] dot per layer ----
    def gru(inp, h, wname, wnname, bname):
        g = dot(jnp.concatenate([inp, h], axis=-1), W(wname))           # [B, 3H]
        b = W(bname)                                                    # [4, H]
        r = jax.nn.sigmoid(g[:, 0:H] + b[0:1])
        z = jax.nn.sigmoid(g[:, H:2 * H] + b[1:2])
        n = jnp.tanh(g[:, 2 * H:3 * H] + b[2:3] + r * (dot(h, W(wnname)) + b[3:4]))
        return (1.0 - z) * n + z * h

    h0 = gru(x, h_ref[0], "w0", "whh0n", "bg0")                         # [B, H]
    h1 = gru(h0, h_ref[1], "w1", "whh1n", "bg1")                        # [B, H]

    # ---- shared per-batch hidden-layer terms (generator | discriminator), one merged dot ----
    xp = dot(x, W("wx"))                                                # [B, 2H]
    g_lin = xp[:, 0:H] + dot(h1, W("wh1g"))                             # gen:  x-proj + h1-proj
    d_lin = xp[:, H:2 * H]                                              # disc: x-proj
    gd_lin = jnp.concatenate([g_lin, d_lin], axis=-1) + W("bgd1")       # [B, 2H]

    # ---- per-particle terms: [noise | pprev] @ block-diag weight, one dot ----
    np_in = jnp.concatenate([noise_ref[...], pprev_ref[...]], axis=-1)  # [B*K, 20]
    pp = dot(np_in, W("wnp"))                                           # [B*K, 2H]

    # broadcast [B, 2H] -> [B*K, 2H] (b-major, k-minor), single broadcast+reshape
    gd_b = jnp.broadcast_to(gd_lin[:, None, :], (B, K, 2 * H)).reshape(rows, 2 * H)
    hid = jnp.maximum(gd_b + pp, 0.0)                                   # [gen hid | disc hid]

    # ---- fused output heads: p_n (cols 0:16) and disc logit (col 16) in one dot ----
    fin = dot(hid, W("wfin")) + W("bfin")                               # [B*K, 17]

    # ---- lane-dense [B*K, 128] output slab, single unmasked store ----
    h_cat = jnp.concatenate([h0, h1], axis=-1)                          # [B, 2H]
    h_slab = jnp.concatenate(
        [h_cat, jnp.zeros((rows - B, 2 * H), f32)], axis=0)             # [B*K, 2H]
    slab = jnp.concatenate([
        fin,                                                            # cols [0, 17)
        jnp.zeros((rows, _H_OFF - (dim_state + 1)), f32),               # cols [17, 32)
        h_slab,                                                         # cols [32, 96)
        jnp.zeros((rows, SLAB_LANES - (_H_OFF + 2 * H)), f32),          # cols [96, 128)
    ], axis=-1)
    out_ref[...] = slab


def _fused_step(params, x, h_tm1, noise, pprev_flat):
    """One fused pallas_call: 2 GRU layers + generator MLP + discriminator MLP."""
    B = x.shape[0]
    return pl.pallas_call(
        _dpf_step_kernel,
        out_shape=jax.ShapeDtypeStruct((B * K, SLAB_LANES), jnp.float32),
        in_specs=[VMEM_SPEC] * 5,
        out_specs=VMEM_SPEC,
        compiler_params=pltpu.CompilerParams(vmem_limit_bytes=4 * 1024 * 1024),
    )(x, h_tm1, noise, pprev_flat, params["w_slab"])


# ----------------------------- parameter init (deterministic) -----------------------------
def init_params(key):
    keys = jax.random.split(key, 32)

    def nrm(k, shape, s=0.1):
        return jax.random.normal(k, shape, dtype=jnp.float32) * s

    H = dim_hidden
    params = {"h0": nrm(keys[0], (b_num_layers, 1, H), 1.0)}
    blocks = {}
    ki = 1

    # ---- GRU layers (gate order r, z, n; PyTorch GRU semantics) ----
    for l, in_dim in enumerate([GRU_IN, H]):
        wih = [nrm(keys[ki + g], (in_dim, H)) for g in range(3)]
        whh = [nrm(keys[ki + 3 + g], (H, H)) for g in range(3)]
        bih = nrm(keys[ki + 6], (3, H))
        bhh = nrm(keys[ki + 7], (3, H))
        ki += 8
        blocks[f"w{l}"] = jnp.concatenate([
            jnp.concatenate([wih[0], wih[1], wih[2]], axis=1),                 # input rows
            jnp.concatenate([whh[0], whh[1], jnp.zeros((H, H))], axis=1),      # hidden rows
        ], axis=0)
        blocks[f"whh{l}n"] = whh[2]
        # r/z biases pre-summed; n-gate biases kept separate (PyTorch: r*(Whh_n h + bhh_n))
        blocks[f"bg{l}"] = jnp.stack(
            [bih[0] + bhh[0], bih[1] + bhh[1], bih[2], bhh[2]], axis=0)

    # ---- generator Linear(H+16+4, H) split row-wise into (h | x | noise), then Linear(H, 16) ----
    gen_w1h = nrm(keys[ki + 0], (H, H))
    gen_w1x = nrm(keys[ki + 1], (dim_state, H))
    gen_w1n = nrm(keys[ki + 2], (4, H))
    gen_b1 = nrm(keys[ki + 3], (H,))
    gen_w2 = nrm(keys[ki + 4], (H, dim_state))
    gen_b2 = nrm(keys[ki + 5], (dim_state,))
    ki += 6

    # ---- discriminator Linear(16+16, H) split row-wise into (p | x), then Linear(H, 1) ----
    disc_w1p = nrm(keys[ki + 0], (dim_state, H))
    disc_w1x = nrm(keys[ki + 1], (dim_state, H))
    disc_b1 = nrm(keys[ki + 2], (H,))
    disc_w2 = nrm(keys[ki + 3], (H, 1))
    disc_b2 = nrm(keys[ki + 4], (1,))
    ki += 5

    blocks["wx"] = jnp.concatenate([gen_w1x, disc_w1x], axis=1)                        # [16, 64]
    blocks["wh1g"] = gen_w1h                                                           # [32, 32]
    blocks["wnp"] = jnp.concatenate([
        jnp.concatenate([gen_w1n, jnp.zeros((4, H))], axis=1),                         # noise rows
        jnp.concatenate([jnp.zeros((dim_state, H)), disc_w1p], axis=1),                # pprev rows
    ], axis=0)                                                                         # [20, 64]
    blocks["wfin"] = jnp.concatenate([
        jnp.concatenate([gen_w2, jnp.zeros((H, 1))], axis=1),                          # gen hid rows
        jnp.concatenate([jnp.zeros((H, dim_state)), disc_w2], axis=1),                 # disc hid rows
    ], axis=0)                                                                         # [64, 17]
    blocks["bgd1"] = jnp.concatenate([gen_b1, disc_b1])[None, :]                       # [1, 64]
    blocks["bfin"] = jnp.concatenate([gen_b2, disc_b2])[None, :]                       # [1, 17]

    w_slab = jnp.zeros((W_SLAB_ROWS, SLAB_LANES), jnp.float32)
    for name, mat in blocks.items():
        r0 = _WOFF[name]
        nr, nc = _WBLOCK_DIMS[name]
        assert mat.shape == (nr, nc), (name, mat.shape)
        w_slab = w_slab.at[r0:r0 + nr, 0:nc].set(mat.astype(jnp.float32))
    params["w_slab"] = w_slab

    params["dr_w"] = nrm(keys[ki + 0], (IN_CHANNELS + 1, n_obj * 4))
    params["dr_b"] = nrm(keys[ki + 1], (n_obj * 4,))
    return params


# ----------------------------- plain-JAX glue (shapes / undefined helpers) -----------------------------
def derenderer(params, o_t, d_t):
    # TODO(synk): Derenderer is an external checkpoint-loaded module of unknown architecture;
    # synthetic stand-in: global-average-pool over H,W + linear head.
    B = o_t.shape[0]
    feat = jnp.concatenate([o_t, d_t], axis=1)       # [B, C+1, H, W] (NCHW)
    pooled = feat.mean(axis=(2, 3))                  # [B, C+1]
    out = pooled @ params["dr_w"] + params["dr_b"]   # [B, n_obj*4]
    out = out.reshape(B, n_obj, 4)
    return out[..., :3], out[..., 3]                 # d: [B, n_obj, 3], e: [B, n_obj]


def rotate_state2(d, a):
    # TODO(synk): rotate_state2 is undefined in the source; assume 2D rotation of each
    # object's (x, y) by the action angle a_tm1, third component unchanged.
    theta = a                                        # [B, 1]
    c, s = jnp.cos(theta), jnp.sin(theta)            # [B, 1]
    x, y, r = d[..., 0], d[..., 1], d[..., 2]        # [B, n_obj]
    return jnp.stack([c * x - s * y, s * x + c * y, r], axis=-1)


def resample(p_t, w_t, n, key):
    """soft-resampling (categorical sampling / gather kept in plain JAX; not a Pallas hot path)."""
    B = p_t.shape[0]
    w_t = w_t - jax.nn.logsumexp(w_t, axis=1, keepdims=True)
    uniform_w = jnp.full((B, K), -np.log(K), dtype=jnp.float32)
    if ALPHA < 1.0:
        q_w = jnp.logaddexp(w_t + np.log(ALPHA), uniform_w + np.log(1.0 - ALPHA))
        q_w = q_w - jax.nn.logsumexp(q_w, axis=-1, keepdims=True)
        w_t = w_t - q_w
    else:
        q_w = w_t
        w_t = uniform_w
    i = jax.random.categorical(key, q_w, axis=-1, shape=(n, B)).T     # [B, n]
    w = jnp.take_along_axis(w_t, i, axis=1)
    w = w - jax.nn.logsumexp(w, axis=1, keepdims=True) + np.log(n / K)
    idx = jnp.broadcast_to(i[:, :, None, None], (B, n, n_obj, dim_obj))
    p = jnp.take_along_axis(p_t, idx, axis=1)
    return p, w


# ----------------------------- DPF forward -----------------------------
@functools.partial(jax.jit, static_argnames=("n_new", "resample_flag"))
def dpf_forward(params, o_t, d_t, a_tm1=None, p_tm1=None, w_tm1=None, h_tm1=None,
                n_new=0, resample_flag=False, *, key):
    B = o_t.shape[0]
    k_gen, k_rs = jax.random.split(key)
    first = p_tm1 is None

    if first:
        a_tm1 = jnp.zeros((B, 1), dtype=jnp.float32)
        h_tm1 = jnp.tile(params["h0"], (1, B, 1))                     # [L, B, H]

    d, e = derenderer(params, o_t, d_t)
    x = rotate_state2(d, a_tm1)
    x = jnp.concatenate([x, e[..., None]], axis=-1).reshape(B, 16)    # [B, 16]

    noise = jax.random.normal(k_gen, (B * K, 4), dtype=jnp.float32) * 0.01
    pprev_flat = (jnp.zeros((B * K, dim_state), jnp.float32) if first
                  else p_tm1.reshape(B * K, dim_state))

    # one fused kernel: GRU x2 + generator MLP + discriminator MLP, lane-dense output slab
    slab = _fused_step(params, x, h_tm1, noise, pprev_flat)
    p_n = slab[:, :dim_state].reshape(B, K, n_obj, dim_obj)
    logits = slab[:, dim_state].reshape(B, K)
    h = slab[:B, _H_OFF:_H_OFF + b_num_layers * dim_hidden].reshape(
        B, b_num_layers, dim_hidden).swapaxes(0, 1)                   # [L, B, H]

    if first:
        w_t = jnp.full((B, K), -np.log(K), dtype=jnp.float32)
        return p_n, w_t, p_n, x, h

    w_t = w_tm1 + logits
    w_t = w_t - w_t.max(axis=1, keepdims=True)
    p_t = p_tm1
    if resample_flag:
        if n_new > 0:
            p_t, w_t = resample(p_t, w_t, K - n_new, k_rs)
            w_t = jnp.concatenate(
                [w_t, jnp.full((B, n_new), -np.log(K), dtype=jnp.float32)], axis=1)
            p_t = jnp.concatenate([p_t, p_n[:, :n_new]], axis=1)
        else:
            p_t, w_t = resample(p_t, w_t, K, k_rs)
    return p_t, w_t, p_n, x, h


# ----------------------------- demo -----------------------------
if __name__ == "__main__":
    root = jax.random.PRNGKey(0)
    kp, ko, kd, k1, k2 = jax.random.split(root, 5)

    params = init_params(kp)
    B, C, H, W = 2, IN_CHANNELS, 16, 16
    o_t = jax.random.normal(ko, (B, C, H, W), dtype=jnp.float32)
    d_t = jax.random.normal(kd, (B, 1, H, W), dtype=jnp.float32)

    # step 0: no previous particles
    p, w, p_n, x, h = dpf_forward(params, o_t, d_t, key=k1)

    # step 1: previous particles + belief update + soft-resampling path
    a_tm1 = jnp.full((B, 1), 0.1, dtype=jnp.float32)
    n_new = int(0.7 * K)
    p2, w2, p_n2, x2, h2 = dpf_forward(params, o_t, d_t, a_tm1, p, w, h,
                                       n_new=n_new, resample_flag=True, key=k2)

    jax.block_until_ready((p2, w2, p_n2, x2, h2))
    assert p2.shape == (B, K, n_obj, dim_obj)
    assert w2.shape == (B, K)
    assert p_n2.shape == (B, K, n_obj, dim_obj)
    assert x2.shape == (B, 16)
    assert h2.shape == (b_num_layers, B, dim_hidden)
    print("KERNEL_OK")
</pallas_src>

<mosaic_0001>
module attributes {stable_mosaic.version = 11 : i64} {
  func.func @_dpf_step_kernel(%arg0: memref<2x16xf32, #tpu.memory_space<vmem>>, %arg1: memref<2x2x32xf32, #tpu.memory_space<vmem>>, %arg2: memref<16x4xf32, #tpu.memory_space<vmem>>, %arg3: memref<16x16xf32, #tpu.memory_space<vmem>>, %arg4: memref<344x128xf32, #tpu.memory_space<vmem>>, %arg5: memref<16x128xf32, #tpu.memory_space<vmem>>) attributes {dimension_semantics = [], scalar_prefetch = 0 : i64, scratch_operands = 0 : i64, tpu.core_type = #tpu.core_type<tc>} {
    %c0 = arith.constant 0 : index
    %c0_0 = arith.constant 0 : index
    %0 = vector.load %arg0[%c0, %c0_0] : memref<2x16xf32, #tpu.memory_space<vmem>>, vector<2x16xf32>
    %c0_1 = arith.constant 0 : index
    %c0_2 = arith.constant 0 : index
    %c0_3 = arith.constant 0 : index
    %1 = vector.load %arg1[%c0_1, %c0_2, %c0_3] : memref<2x2x32xf32, #tpu.memory_space<vmem>>, vector<1x2x32xf32>
    %2 = vector.shape_cast %1 : vector<1x2x32xf32> to vector<2x32xf32>
    %3 = tpu.concatenate %0, %2 in 1 : vector<2x16xf32>, vector<2x32xf32> -> vector<2x48xf32>
    %c0_4 = arith.constant 0 : index
    %c0_5 = arith.constant 0 : index
    %4 = vector.load %arg4[%c0_4, %c0_5] : memref<344x128xf32, #tpu.memory_space<vmem>>, vector<48x96xf32>
    %cst = arith.constant dense<0.000000e+00> : vector<2x96xf32>
    %5 = tpu.matmul %3, %4, %cst {dimension_numbers = #tpu.dot_dimension_numbers<[1], [0], [0], [1], [0, 0, 1, 1], [], []>} : vector<2x48xf32>, vector<48x96xf32>, vector<2x96xf32> -> vector<2x96xf32>
    %c312 = arith.constant 312 : index
    %c0_6 = arith.constant 0 : index
    %6 = vector.load %arg4[%c312, %c0_6] : memref<344x128xf32, #tpu.memory_space<vmem>>, vector<4x32xf32>
    %7 = vector.extract_strided_slice %5 {offsets = [0, 0], sizes = [2, 32], strides = [1, 1]} : vector<2x96xf32> to vector<2x32xf32>
    %8 = vector.extract_strided_slice %6 {offsets = [0, 0], sizes = [1, 32], strides = [1, 1]} : vector<4x32xf32> to vector<1x32xf32>
    %9 = vector.broadcast %8 : vector<1x32xf32> to vector<2x32xf32>
    %10 = arith.addf %7, %9 : vector<2x32xf32>
    %11 = arith.negf %10 : vector<2x32xf32>
    %12 = math.exp %11 : vector<2x32xf32>
    %cst_7 = arith.constant 1.000000e+00 : f32
    %13 = vector.broadcast %cst_7 : f32 to vector<2x32xf32>
    %14 = arith.addf %13, %12 : vector<2x32xf32>
    %15 = arith.divf %13, %14 : vector<2x32xf32>
    %16 = vector.extract_strided_slice %5 {offsets = [0, 32], sizes = [2, 32], strides = [1, 1]} : vector<2x96xf32> to vector<2x32xf32>
    %17 = vector.extract_strided_slice %6 {offsets = [1, 0], sizes = [1, 32], strides = [1, 1]} : vector<4x32xf32> to vector<1x32xf32>
    %18 = vector.broadcast %17 : vector<1x32xf32> to vector<2x32xf32>
    %19 = arith.addf %16, %18 : vector<2x32xf32>
    %20 = arith.negf %19 : vector<2x32xf32>
    %21 = math.exp %20 : vector<2x32xf32>
    %cst_8 = arith.constant 1.000000e+00 : f32
    %22 = vector.broadcast %cst_8 : f32 to vector<2x32xf32>
    %23 = arith.addf %22, %21 : vector<2x32xf32>
    %24 = arith.divf %22, %23 : vector<2x32xf32>
    %25 = vector.extract_strided_slice %5 {offsets = [0, 64], sizes = [2, 32], strides = [1, 1]} : vector<2x96xf32> to vector<2x32xf32>
    %26 = vector.extract_strided_slice %6 {offsets = [2, 0], sizes = [1, 32], strides = [1, 1]} : vector<4x32xf32> to vector<1x32xf32>
    %27 = vector.broadcast %26 : vector<1x32xf32> to vector<2x32xf32>
    %28 = arith.addf %25, %27 : vector<2x32xf32>
    %c48 = arith.constant 48 : index
    %c0_9 = arith.constant 0 : index
    %29 = vector.load %arg4[%c48, %c0_9] : memref<344x128xf32, #tpu.memory_space<vmem>>, vector<32x32xf32>
    %cst_10 = arith.constant dense<0.000000e+00> : vector<2x32xf32>
    %30 = tpu.matmul %2, %29, %cst_10 {dimension_numbers = #tpu.dot_dimension_numbers<[1], [0], [0], [1], [0, 0, 1, 1], [], []>} : vector<2x32xf32>, vector<32x32xf32>, vector<2x32xf32> -> vector<2x32xf32>
    %31 = vector.extract_strided_slice %6 {offsets = [3, 0], sizes = [1, 32], strides = [1, 1]} : vector<4x32xf32> to vector<1x32xf32>
    %32 = vector.broadcast %31 : vector<1x32xf32> to vector<2x32xf32>
    %33 = arith.addf %30, %32 : vector<2x32xf32>
    %34 = arith.mulf %15, %33 : vector<2x32xf32>
    %35 = arith.addf %28, %34 : vector<2x32xf32>
    %36 = math.tanh %35 : vector<2x32xf32>
    %cst_11 = arith.constant 1.000000e+00 : f32
    %37 = vector.broadcast %cst_11 : f32 to vector<2x32xf32>
    %38 = arith.subf %37, %24 : vector<2x32xf32>
    %39 = arith.mulf %38, %36 : vector<2x32xf32>
    %40 = arith.mulf %24, %2 : vector<2x32xf32>
    %41 = arith.addf %39, %40 : vector<2x32xf32>
    %c1 = arith.constant 1 : index
    %c0_12 = arith.constant 0 : index
    %c0_13 = arith.constant 0 : index
    %42 = vector.load %arg1[%c1, %c0_12, %c0_13] : memref<2x2x32xf32, #tpu.memory_space<vmem>>, vector<1x2x32xf32>
    %43 = vector.shape_cast %42 : vector<1x2x32xf32> to vector<2x32xf32>
    %44 = tpu.concatenate %41, %43 in 1 : vector<2x32xf32>, vector<2x32xf32> -> vector<2x64xf32>
    %c80 = arith.constant 80 : index
    %c0_14 = arith.constant 0 : index
    %45 = vector.load %arg4[%c80, %c0_14] : memref<344x128xf32, #tpu.memory_space<vmem>>, vector<64x96xf32>
    %cst_15 = arith.constant dense<0.000000e+00> : vector<2x96xf32>
    %46 = tpu.matmul %44, %45, %cst_15 {dimension_numbers = #tpu.dot_dimension_numbers<[1], [0], [0], [1], [0, 0, 1, 1], [], []>} : vector<2x64xf32>, vector<64x96xf32>, vector<2x96xf32> -> vector<2x96xf32>
    %c320 = arith.constant 320 : index
    %c0_16 = arith.constant 0 : index
    %47 = vector.load %arg4[%c320, %c0_16] : memref<344x128xf32, #tpu.memory_space<vmem>>, vector<4x32xf32>
    %48 = vector.extract_strided_slice %46 {offsets = [0, 0], sizes = [2, 32], strides = [1, 1]} : vector<2x96xf32> to vector<2x32xf32>
    %49 = vector.extract_strided_slice %47 {offsets = [0, 0], sizes = [1, 32], strides = [1, 1]} : vector<4x32xf32> to vector<1x32xf32>
    %50 = vector.broadcast %49 : vector<1x32xf32> to vector<2x32xf32>
    %51 = arith.addf %48, %50 : vector<2x32xf32>
    %52 = arith.negf %51 : vector<2x32xf32>
    %53 = math.exp %52 : vector<2x32xf32>
    %cst_17 = arith.constant 1.000000e+00 : f32
    %54 = vector.broadcast %cst_17 : f32 to vector<2x32xf32>
    %55 = arith.addf %54, %53 : vector<2x32xf32>
    %56 = arith.divf %54, %55 : vector<2x32xf32>
    %57 = vector.extract_strided_slice %46 {offsets = [0, 32], sizes = [2, 32], strides = [1, 1]} : vector<2x96xf32> to vector<2x32xf32>
    %58 = vector.extract_strided_slice %47 {offsets = [1, 0], sizes = [1, 32], strides = [1, 1]} : vector<4x32xf32> to vector<1x32xf32>
    %59 = vector.broadcast %58 : vector<1x32xf32> to vector<2x32xf32>
    %60 = arith.addf %57, %59 : vector<2x32xf32>
    %61 = arith.negf %60 : vector<2x32xf32>
    %62 = math.exp %61 : vector<2x32xf32>
    %cst_18 = arith.constant 1.000000e+00 : f32
    %63 = vector.broadcast %cst_18 : f32 to vector<2x32xf32>
    %64 = arith.addf %63, %62 : vector<2x32xf32>
    %65 = arith.divf %63, %64 : vector<2x32xf32>
    %66 = vector.extract_strided_slice %46 {offsets = [0, 64], sizes = [2, 32], strides = [1, 1]} : vector<2x96xf32> to vector<2x32xf32>
    %67 = vector.extract_strided_slice %47 {offsets = [2, 0], sizes = [1, 32], strides = [1, 1]} : vector<4x32xf32> to vector<1x32xf32>
    %68 = vector.broadcast %67 : vector<1x32xf32> to vector<2x32xf32>
    %69 = arith.addf %66, %68 : vector<2x32xf32>
    %c144 = arith.constant 144 : index
    %c0_19 = arith.constant 0 : index
    %70 = vector.load %arg4[%c144, %c0_19] : memref<344x128xf32, #tpu.memory_space<vmem>>, vector<32x32xf32>
    %cst_20 = arith.constant dense<0.000000e+00> : vector<2x32xf32>
    %71 = tpu.matmul %43, %70, %cst_20 {dimension_numbers = #tpu.dot_dimension_numbers<[1], [0], [0], [1], [0, 0, 1, 1], [], []>} : vector<2x32xf32>, vector<32x32xf32>, vector<2x32xf32> -> vector<2x32xf32>
    %72 = vector.extract_strided_slice %47 {offsets = [3, 0], sizes = [1, 32], strides = [1, 1]} : vector<4x32xf32> to vector<1x32xf32>
    %73 = vector.broadcast %72 : vector<1x32xf32> to vector<2x32xf32>
    %74 = arith.addf %71, %73 : vector<2x32xf32>
    %75 = arith.mulf %56, %74 : vector<2x32xf32>
    %76 = arith.addf %69, %75 : vector<2x32xf32>
    %77 = math.tanh %76 : vector<2x32xf32>
    %cst_21 = arith.constant 1.000000e+00 : f32
    %78 = vector.broadcast %cst_21 : f32 to vector<2x32xf32>
    %79 = arith.subf %78, %65 : vector<2x32xf32>
    %80 = arith.mulf %79, %77 : vector<2x32xf32>
    %81 = arith.mulf %65, %43 : vector<2x32xf32>
    %82 = arith.addf %80, %81 : vector<2x32xf32>
    %c176 = arith.constant 176 : index
    %c0_22 = arith.constant 0 : index
    %83 = vector.load %arg4[%c176, %c0_22] : memref<344x128xf32, #tpu.memory_space<vmem>>, vector<16x64xf32>
    %cst_23 = arith.constant dense<0.000000e+00> : vector<2x64xf32>
    %84 = tpu.matmul %0, %83, %cst_23 {dimension_numbers = #tpu.dot_dimension_numbers<[1], [0], [0], [1], [0, 0, 1, 1], [], []>} : vector<2x16xf32>, vector<16x64xf32>, vector<2x64xf32> -> vector<2x64xf32>
    %85 = vector.extract_strided_slice %84 {offsets = [0, 0], sizes = [2, 32], strides = [1, 1]} : vector<2x64xf32> to vector<2x32xf32>
    %c192 = arith.constant 192 : index
    %c0_24 = arith.constant 0 : index
    %86 = vector.load %arg4[%c192, %c0_24] : memref<344x128xf32, #tpu.memory_space<vmem>>, vector<32x32xf32>
    %cst_25 = arith.constant dense<0.000000e+00> : vector<2x32xf32>
    %87 = tpu.matmul %82, %86, %cst_25 {dimension_numbers = #tpu.dot_dimension_numbers<[1], [0], [0], [1], [0, 0, 1, 1], [], []>} : vector<2x32xf32>, vector<32x32xf32>, vector<2x32xf32> -> vector<2x32xf32>
    %88 = arith.addf %85, %87 : vector<2x32xf32>
    %89 = vector.extract_strided_slice %84 {offsets = [0, 32], sizes = [2, 32], strides = [1, 1]} : vector<2x64xf32> to vector<2x32xf32>
    %90 = tpu.concatenate %88, %89 in 1 : vector<2x32xf32>, vector<2x32xf32> -> vector<2x64xf32>
    %c328 = arith.constant 328 : index
    %c0_26 = arith.constant 0 : index
    %91 = vector.load %arg4[%c328, %c0_26] : memref<344x128xf32, #tpu.memory_space<vmem>>, vector<1x64xf32>
    %92 = vector.broadcast %91 : vector<1x64xf32> to vector<2x64xf32>
    %93 = arith.addf %90, %92 : vector<2x64xf32>
    %c0_27 = arith.constant 0 : index
    %c0_28 = arith.constant 0 : index
    %94 = vector.load %arg2[%c0_27, %c0_28] : memref<16x4xf32, #tpu.memory_space<vmem>>, vector<16x4xf32>
    %c0_29 = arith.constant 0 : index
    %c0_30 = arith.constant 0 : index
    %95 = vector.load %arg3[%c0_29, %c0_30] : memref<16x16xf32, #tpu.memory_space<vmem>>, vector<16x16xf32>
    %96 = tpu.concatenate %94, %95 in 1 : vector<16x4xf32>, vector<16x16xf32> -> vector<16x20xf32>
    %c224 = arith.constant 224 : index
    %c0_31 = arith.constant 0 : index
    %97 = vector.load %arg4[%c224, %c0_31] : memref<344x128xf32, #tpu.memory_space<vmem>>, vector<20x64xf32>
    %cst_32 = arith.constant dense<0.000000e+00> : vector<16x64xf32>
    %98 = tpu.matmul %96, %97, %cst_32 {dimension_numbers = #tpu.dot_dimension_numbers<[1], [0], [0], [1], [0, 0, 1, 1], [], []>} : vector<16x20xf32>, vector<20x64xf32>, vector<16x64xf32> -> vector<16x64xf32>
    %99 = vector.shape_cast %93 : vector<2x64xf32> to vector<2x1x64xf32>
    %100 = vector.shape_cast %99 : vector<2x1x64xf32> to vector<2x1x64xf32>
    %101 = vector.broadcast %100 : vector<2x1x64xf32> to vector<2x8x64xf32>
    %102 = vector.shape_cast %101 : vector<2x8x64xf32> to vector<16x64xf32>
    %103 = arith.addf %102, %98 : vector<16x64xf32>
    %cst_33 = arith.constant 0.000000e+00 : f32
    %104 = vector.broadcast %cst_33 : f32 to vector<16x64xf32>
    %105 = arith.maximumf %103, %104 : vector<16x64xf32>
    %c248 = arith.constant 248 : index
    %c0_34 = arith.constant 0 : index
    %106 = vector.load %arg4[%c248, %c0_34] : memref<344x128xf32, #tpu.memory_space<vmem>>, vector<64x17xf32>
    %cst_35 = arith.constant dense<0.000000e+00> : vector<16x17xf32>
    %107 = tpu.matmul %105, %106, %cst_35 {dimension_numbers = #tpu.dot_dimension_numbers<[1], [0], [0], [1], [0, 0, 1, 1], [], []>} : vector<16x64xf32>, vector<64x17xf32>, vector<16x17xf32> -> vector<16x17xf32>
    %c336 = arith.constant 336 : index
    %c0_36 = arith.constant 0 : index
    %108 = vector.load %arg4[%c336, %c0_36] : memref<344x128xf32, #tpu.memory_space<vmem>>, vector<1x17xf32>
    %109 = vector.broadcast %108 : vector<1x17xf32> to vector<16x17xf32>
    %110 = arith.addf %107, %109 : vector<16x17xf32>
    %111 = tpu.concatenate %41, %82 in 1 : vector<2x32xf32>, vector<2x32xf32> -> vector<2x64xf32>
    %cst_37 = arith.constant 0.000000e+00 : f32
    %112 = vector.broadcast %cst_37 : f32 to vector<14x64xf32>
    %113 = tpu.concatenate %111, %112 in 0 : vector<2x64xf32>, vector<14x64xf32> -> vector<16x64xf32>
    %cst_38 = arith.constant 0.000000e+00 : f32
    %114 = vector.broadcast %cst_38 : f32 to vector<16x15xf32>
    %cst_39 = arith.constant 0.000000e+00 : f32
    %115 = vector.broadcast %cst_39 : f32 to vector<16x32xf32>
    %116 = tpu.concatenate %110, %114, %113, %115 in 1 : vector<16x17xf32>, vector<16x15xf32>, vector<16x64xf32>, vector<16x32xf32> -> vector<16x128xf32>
    %c0_40 = arith.constant 0 : index
    %c0_41 = arith.constant 0 : index
    %117 = vector.load %arg5[%c0_40, %c0_41] : memref<16x128xf32, #tpu.memory_space<vmem>>, vector<16x128xf32>
    tpu.vector_store %arg5[%c0_40, %c0_41], %116 {strides = array<i32>} : memref<16x128xf32, #tpu.memory_space<vmem>>, vector<16x128xf32>,
    return
  }
}

</mosaic_0001>

<llo_original>
// kernel: dpf_forward.3
$region0: #{dpf_forward.3}
  #allocation0 [shape = 'u32[]', space=smem, size = 0x4, offset = 0x4, fixed_abs, tag = 'smem constant byte address 0x4 - core index']
  #allocation1 [shape = 'u32[72,128]{1,0:T(1,128)}', space=vmem, size = 0x9000, scoped, tag = 'internal scratch']
  %s0 = inlined_call_operand.vmem [shape: f32[2,16], index: 0, kind: input, shape index: {}]
  %s1 = inlined_call_operand.vmem [shape: f32[2,2,32], index: 1, kind: input, shape index: {}]
  %s2 = inlined_call_operand.vmem [shape: f32[16,4], index: 2, kind: input, shape index: {}]
  %s3 = inlined_call_operand.vmem [shape: f32[16,16], index: 3, kind: input, shape index: {}]
  %s4 = inlined_call_operand.hbm [shape: f32[344,128], index: 4, kind: input, shape index: {}]
  %s5 = inlined_call_operand.vmem [shape: f32[16,128], index: 5, kind: output, shape index: {}]
  %s6 = sld [smem:[#allocation0]]
  $region34: #{dpf_forward.3} parent=0
    _
  %s8 = ssub.s32 1, %s6
  %s9 = scalar_select 0, %s8, %s6
  $region1: #{dpf_forward.3} parent=0
    #allocation2 [shape = 'u8[176128]{0}', space=vmem, size = 0x2b000, scoped, tag = 'input window, operand 4, single buffered']
    #allocation3 [shape = 's32[1]{0}', space=sflag, size = 0x4, scoped, tag = 'scoped memory for dpf_forward.3']
    %10 = vsyncpa [#allocation3], 0
    // Predicated region
    $region2: #{dpf_forward.3} parent=1 // pred_check
      _
    $region3: #{dpf_forward.3} parent=1 // pred_check_branch
      %12 = sbr.rel (0) target = $region5
    $region4: #{dpf_forward.3} parent=1 // pred_region
      _
    $region5: #{dpf_forward.3} parent=1 // pred_fallthru
      _
    // Predicated region
    $region6: #{dpf_forward.3} parent=1 // pred_check
      _
    $region7: #{dpf_forward.3} parent=1 // pred_check_branch
      %14 = sbr.rel (0) target = $region9
    $region8: #{dpf_forward.3} parent=1 // pred_region
      _
    $region9: #{dpf_forward.3} parent=1 // pred_fallthru
      _
    // Predicated region
    $region10: #{dpf_forward.3} parent=1 // pred_check
      _
    $region11: #{dpf_forward.3} parent=1 // pred_check_branch
      %16 = sbr.rel (0) target = $region13
    $region12: #{dpf_forward.3} parent=1 // pred_region
      _
    $region13: #{dpf_forward.3} parent=1 // pred_fallthru
      _
    // Predicated region
    $region14: #{dpf_forward.3} parent=1 // pred_check
      _
    $region15: #{dpf_forward.3} parent=1 // pred_check_branch
      %18 = sbr.rel (0) target = $region17
    $region16: #{dpf_forward.3} parent=1 // pred_region
      _
    $region17: #{dpf_forward.3} parent=1 // pred_fallthru
      _
    // Predicated region
    $region18: #{dpf_forward.3} parent=1 // pred_check
      _
    $region19: #{dpf_forward.3} parent=1 // pred_check_branch
      %20 = sbr.rel (0) target = $region21
    $region20: #{dpf_forward.3} parent=1 // pred_region
      %22 = vsyncadd [#allocation3], 0
      %s23 = sshll.u32 %s4, 4
      %s24 = int_to_ptr.hbm [resolvable:$true] %s23
      %s25 = sshll.u32 [#allocation2], 4
      %s26 = int_to_ptr.vmem [resolvable:$true] %s25
      %31 = dma.hbm_to_vmem [thread:$0]  %s24, 5504, %s26, [#allocation3], 128, 128, 8
    $region21: #{dpf_forward.3} parent=1 // pred_fallthru
      _
    // Predicated region
    $region22: #{dpf_forward.3} parent=1 // pred_check
      _
    $region23: #{dpf_forward.3} parent=1 // pred_check_branch
      %33 = sbr.rel (0) target = $region25
    $region24: #{dpf_forward.3} parent=1 // pred_region
      %35 = dma.done [#allocation3], 5504
    $region25: #{dpf_forward.3} parent=1 // pred_fallthru
      _
    %v36 = vld [vmem:[%s0] sm:$0x3]
    %v37 = vld [vmem:[%s1] sm:$0x3]
    %39 = vrot.lane.b32.xlu0 %v37, 16
    %v40 = vpop.permute.xlu0 %39
    %vm42 = vcmask 130048
    %v43 = vsel %vm42, %v36, %v40
    %v44 = vld [vmem:[#allocation2] sm:$0xff]
    %v45 = vld [vmem:[#allocation2 + $0x8] sm:$0xff]
    %v46 = vld [vmem:[#allocation2 + $0x10] sm:$0xff]
    %v47 = vld [vmem:[#allocation2 + $0x18] sm:$0xff]
    %v48 = vld [vmem:[#allocation2 + $0x20] sm:$0xff]
    %v49 = vld [vmem:[#allocation2 + $0x28] sm:$0xff]
    %vm50 = vcmask 392192
    %v52 = vsel %vm50, %v43, 0
    %54 = vmatpush.msra.mxu0 0.0
    %55 = vmatpush.msra.mxu0 0.0
    %56 = vmatpush.msra.mxu0 0.0
    %57 = vmatpush.msra.mxu0 0.0
    %58 = vmatpush.msra.mxu0 0.0
    %59 = vmatpush.msra.mxu0 0.0
    %60 = vmatpush.msra.mxu0 0.0
    %61 = vmatpush.msra.mxu0 0.0
    %62 = vmatpush.msra.mxu0 0.0
    %63 = vmatpush.msra.mxu0 0.0
    %64 = vmatpush.msra.mxu0 %v49
    %65 = vmatpush.msra.mxu0 %v48
    %66 = vmatpush.msra.mxu0 %v47
    %67 = vmatpush.msra.mxu0 %v46
    %68 = vmatpush.msra.mxu0 %v45
    %69 = vmatpush.msra.mxu0 %v44
    %70 = vmatmul.f32.gmra.mxu0 %v52
    %v71 = vpop.f32.mrf.mxu0
    %v72 = vadd.f32 0.0, %v71
    %73 = vdwg.mxu0
    %v74 = vld [vmem:[#allocation2 + $0x138] sm:$0xf]
    %v75 = vperm.slane %v74, 0
    %v76 = vadd.f32 %v72, %v75
    %v77 = vxor.u32 %v76, 2147483648
    %v78 = vmul.f32 %v77, 1.442695
    %v79 = vpow.pop %v78
    %v80 = vadd.f32 %v79, 1.0
    %v81 = vrcp.pop %v80
    %v82 = vmul.f32 %v80, %v81
    %v83 = vsub.f32 1.0, %v82
    %v84 = vmul.f32 %v81, %v83
    %v85 = vadd.f32 %v81, %v84
    %vm86 = vweird.f32 %v80
    %vm87 = vweird.f32 %v81
    %vm88 = vmor %vm86, %vm87
    %v89 = vsel %vm88, %v81, %v85
    %v90 = vand.u32 2147483647, %v80
    %vm91 = vcmp.eq.f32.partialorder %v90, 8.507059e+37
    %v92 = vand.u32 %v80, 2147483648
    %v93 = vor.u32 1.1754944e-38, %v92
    %v94 = vsel %vm91, %v93, %v89
    %v95 = vmul.f32 1.0, %v94
    %v96 = vperm.slane %v74, 1
    %98 = vrot.lane.b32.xlu0 %v96, 32
    %v99 = vpop.permute.xlu0 %98
    %v101 = vadd.f32 %v72, %v99
    %v102 = vxor.u32 %v101, 2147483648
    %v103 = vmul.f32 %v102, 1.442695
    %v104 = vpow.pop %v103
    %v105 = vadd.f32 %v104, 1.0
    %v106 = vrcp.pop %v105
    %v107 = vmul.f32 %v105, %v106
    %v108 = vsub.f32 1.0, %v107
    %v109 = vmul.f32 %v106, %v108
    %v110 = vadd.f32 %v106, %v109
    %vm111 = vweird.f32 %v105
    %vm112 = vweird.f32 %v106
    %vm113 = vmor %vm111, %vm112
    %v114 = vsel %vm113, %v106, %v110
    %v115 = vand.u32 2147483647, %v105
    %vm116 = vcmp.eq.f32.partialorder %v115, 8.507059e+37
    %v117 = vand.u32 %v105, 2147483648
    %v118 = vor.u32 1.1754944e-38, %v117
    %v119 = vsel %vm116, %v118, %v114
    %v120 = vmul.f32 1.0, %v119
    %v121 = vperm.slane %v74, 2
    %123 = vrot.lane.b32.xlu0 %v121, 64
    %v124 = vpop.permute.xlu0 %123
    %v126 = vadd.f32 %v72, %v124
    %v127 = vld [vmem:[#allocation2 + $0x30] sm:$0xff]
    %v128 = vld [vmem:[#allocation2 + $0x38] sm:$0xff]
    %v129 = vld [vmem:[#allocation2 + $0x40] sm:$0xff]
    %v130 = vld [vmem:[#allocation2 + $0x48] sm:$0xff]
    %v131 = vperm.slane %v74, 3
    %vm132 = vcmask 261120
    %v133 = vsel %vm132, %v37, 0
    %135 = vmatpush.msra.mxu0 0.0
    %136 = vmatpush.msra.mxu0 0.0
    %137 = vmatpush.msra.mxu0 0.0
    %138 = vmatpush.msra.mxu0 0.0
    %139 = vmatpush.msra.mxu0 0.0
    %140 = vmatpush.msra.mxu0 0.0
    %141 = vmatpush.msra.mxu0 0.0
    %142 = vmatpush.msra.mxu0 0.0
    %143 = vmatpush.msra.mxu0 0.0
    %144 = vmatpush.msra.mxu0 0.0
    %145 = vmatpush.msra.mxu0 0.0
    %146 = vmatpush.msra.mxu0 0.0
    %147 = vmatpush.msra.mxu0 %v130
    %148 = vmatpush.msra.mxu0 %v129
    %149 = vmatpush.msra.mxu0 %v128
    %150 = vmatpush.msra.mxu0 %v127
    %151 = vmatmul.f32.gmra.mxu0 %v133
    %v152 = vpop.f32.mrf.mxu0
    %v153 = vadd.f32 %v131, %v152
    %154 = vdwg.mxu0
    %v155 = vmul.f32 %v95, %v153
    %157 = vrot.lane.b32.xlu0 %v155, 64
    %v158 = vpop.permute.xlu0 %157
    %v160 = vadd.f32 %v126, %v158
    %v161 = vtanh.pop %v160
    %v162 = vsub.f32 1.0, %v120
    %164 = vrot.lane.b32.xlu0 %v161, 96
    %v165 = vpop.permute.xlu0 %164
    %v167 = vmul.f32 %v162, %v165
    %168 = vrot.lane.b32.xlu0 %v37, 32
    %v169 = vpop.permute.xlu0 %168
    %v171 = vmul.f32 %v120, %v169
    %v172 = vadd.f32 %v167, %v171
    %s173 = scalar_lea.vmem %s1, 2
    %v174 = vld [vmem:[%s173] sm:$0x3]
    %176 = vrot.lane.b32.xlu0 %v172, 96
    %v177 = vpop.permute.xlu0 %176
    %180 = vrot.lane.b32.xlu0 %v174, 32
    %v181 = vpop.permute.xlu0 %180
    %v183 = vsel %vm132, %v177, %v181
    %v184 = vld [vmem:[#allocation2 + $0x50] sm:$0xff]
    %v185 = vld [vmem:[#allocation2 + $0x58] sm:$0xff]
    %v186 = vld [vmem:[#allocation2 + $0x60] sm:$0xff]
    %v187 = vld [vmem:[#allocation2 + $0x68] sm:$0xff]
    %v188 = vld [vmem:[#allocation2 + $0x70] sm:$0xff]
    %v189 = vld [vmem:[#allocation2 + $0x78] sm:$0xff]
    %v190 = vld [vmem:[#allocation2 + $0x80] sm:$0xff]
    %v191 = vld [vmem:[#allocation2 + $0x88] sm:$0xff]
    %vm192 = vcmask 523264
    %v194 = vsel %vm192, %v183, 0
    %196 = vmatpush.msra.mxu0 0.0
    %197 = vmatpush.msra.mxu0 0.0
    %198 = vmatpush.msra.mxu0 0.0
    %199 = vmatpush.msra.mxu0 0.0
    %200 = vmatpush.msra.mxu0 0.0
    %201 = vmatpush.msra.mxu0 0.0
    %202 = vmatpush.msra.mxu0 0.0
    %203 = vmatpush.msra.mxu0 0.0
    %204 = vmatpush.msra.mxu0 %v191
    %205 = vmatpush.msra.mxu0 %v190
    %206 = vmatpush.msra.mxu0 %v189
    %207 = vmatpush.msra.mxu0 %v188
    %208 = vmatpush.msra.mxu0 %v187
    %209 = vmatpush.msra.mxu0 %v186
    %210 = vmatpush.msra.mxu0 %v185
    %211 = vmatpush.msra.mxu0 %v184
    %212 = vmatmul.f32.gmra.mxu0 %v194
    %v213 = vpop.f32.mrf.mxu0
    %v214 = vadd.f32 0.0, %v213
    %215 = vdwg.mxu0
    %v216 = vld [vmem:[#allocation2 + $0x140] sm:$0xf]
    %v217 = vperm.slane %v216, 0
    %v218 = vadd.f32 %v214, %v217
    %v219 = vxor.u32 %v218, 2147483648
    %v220 = vmul.f32 %v219, 1.442695
    %v221 = vpow.pop %v220
    %v222 = vadd.f32 %v221, 1.0
    %v223 = vrcp.pop %v222
    %v224 = vmul.f32 %v222, %v223
    %v225 = vsub.f32 1.0, %v224
    %v226 = vmul.f32 %v223, %v225
    %v227 = vadd.f32 %v223, %v226
    %vm228 = vweird.f32 %v222
    %vm229 = vweird.f32 %v223
    %vm230 = vmor %vm228, %vm229
    %v231 = vsel %vm230, %v223, %v227
    %v232 = vand.u32 2147483647, %v222
    %vm233 = vcmp.eq.f32.partialorder %v232, 8.507059e+37
    %v234 = vand.u32 %v222, 2147483648
    %v235 = vor.u32 1.1754944e-38, %v234
    %v236 = vsel %vm233, %v235, %v231
    %v237 = vmul.f32 1.0, %v236
    %v238 = vperm.slane %v216, 1
    %240 = vrot.lane.b32.xlu0 %v238, 32
    %v241 = vpop.permute.xlu0 %240
    %v243 = vadd.f32 %v214, %v241
    %v244 = vxor.u32 %v243, 2147483648
    %v245 = vmul.f32 %v244, 1.442695
    %v246 = vpow.pop %v245
    %v247 = vadd.f32 %v246, 1.0
    %v248 = vrcp.pop %v247
    %v249 = vmul.f32 %v247, %v248
    %v250 = vsub.f32 1.0, %v249
    %v251 = vmul.f32 %v248, %v250
    %v252 = vadd.f32 %v248, %v251
    %vm253 = vweird.f32 %v247
    %vm254 = vweird.f32 %v248
    %vm255 = vmor %vm253, %vm254
    %v256 = vsel %vm255, %v248, %v252
    %v257 = vand.u32 2147483647, %v247
    %vm258 = vcmp.eq.f32.partialorder %v257, 8.507059e+37
    %v259 = vand.u32 %v247, 2147483648
    %v260 = vor.u32 1.1754944e-38, %v259
    %v261 = vsel %vm258, %v260, %v256
    %v262 = vmul.f32 1.0, %v261
    %v263 = vperm.slane %v216, 2
    %265 = vrot.lane.b32.xlu0 %v263, 64
    %v266 = vpop.permute.xlu0 %265
    %v268 = vadd.f32 %v214, %v266
    %v269 = vld [vmem:[#allocation2 + $0x90] sm:$0xff]
    %v270 = vld [vmem:[#allocation2 + $0x98] sm:$0xff]
    %v271 = vld [vmem:[#allocation2 + $0xa0] sm:$0xff]
    %v272 = vld [vmem:[#allocation2 + $0xa8] sm:$0xff]
    %v273 = vperm.slane %v216, 3
    %v274 = vsel %vm132, %v174, 0
    %276 = vmatpush.msra.mxu0 0.0
    %277 = vmatpush.msra.mxu0 0.0
    %278 = vmatpush.msra.mxu0 0.0
    %279 = vmatpush.msra.mxu0 0.0
    %280 = vmatpush.msra.mxu0 0.0
    %281 = vmatpush.msra.mxu0 0.0
    %282 = vmatpush.msra.mxu0 0.0
    %283 = vmatpush.msra.mxu0 0.0
    %284 = vmatpush.msra.mxu0 0.0
    %285 = vmatpush.msra.mxu0 0.0
    %286 = vmatpush.msra.mxu0 0.0
    %287 = vmatpush.msra.mxu0 0.0
    %288 = vmatpush.msra.mxu0 %v272
    %289 = vmatpush.msra.mxu0 %v271
    %290 = vmatpush.msra.mxu0 %v270
    %291 = vmatpush.msra.mxu0 %v269
    %292 = vmatmul.f32.gmra.mxu0 %v274
    %v293 = vpop.f32.mrf.mxu0
    %v294 = vadd.f32 %v273, %v293
    %295 = vdwg.mxu0
    %v296 = vmul.f32 %v237, %v294
    %298 = vrot.lane.b32.xlu0 %v296, 64
    %v299 = vpop.permute.xlu0 %298
    %v301 = vadd.f32 %v268, %v299
    %v302 = vtanh.pop %v301
    %v303 = vsub.f32 1.0, %v262
    %305 = vrot.lane.b32.xlu0 %v302, 96
    %v306 = vpop.permute.xlu0 %305
    %v308 = vmul.f32 %v303, %v306
    %v309 = vmul.f32 %v262, %v181
    %v310 = vadd.f32 %v308, %v309
    %v311 = vld [vmem:[#allocation2 + $0xb0] sm:$0xff]
    %v312 = vld [vmem:[#allocation2 + $0xb8] sm:$0xff]
    %v314 = vsel %vm42, %v36, 0
    %316 = vmatpush.msra.mxu0 0.0
    %317 = vmatpush.msra.mxu0 0.0
    %318 = vmatpush.msra.mxu0 0.0
    %319 = vmatpush.msra.mxu0 0.0
    %320 = vmatpush.msra.mxu0 0.0
    %321 = vmatpush.msra.mxu0 0.0
    %322 = vmatpush.msra.mxu0 0.0
    %323 = vmatpush.msra.mxu0 0.0
    %324 = vmatpush.msra.mxu0 0.0
    %325 = vmatpush.msra.mxu0 0.0
    %326 = vmatpush.msra.mxu0 0.0
    %327 = vmatpush.msra.mxu0 0.0
    %328 = vmatpush.msra.mxu0 0.0
    %329 = vmatpush.msra.mxu0 0.0
    %330 = vmatpush.msra.mxu0 %v312
    %331 = vmatpush.msra.mxu0 %v311
    %332 = vmatmul.f32.gmra.mxu0 %v314
    %v333 = vpop.f32.mrf.mxu0
    %v334 = vadd.f32 0.0, %v333
    %335 = vdwg.mxu0
    %v336 = vld [vmem:[#allocation2 + $0xc0] sm:$0xff]
    %v337 = vld [vmem:[#allocation2 + $0xc8] sm:$0xff]
    %v338 = vld [vmem:[#allocation2 + $0xd0] sm:$0xff]
    %v339 = vld [vmem:[#allocation2 + $0xd8] sm:$0xff]
    %341 = vrot.lane.b32.xlu0 %v310, 96
    %v342 = vpop.permute.xlu0 %341
    %v343 = vsel %vm132, %v342, 0
    %345 = vmatpush.msra.mxu0 0.0
    %346 = vmatpush.msra.mxu0 0.0
    %347 = vmatpush.msra.mxu0 0.0
    %348 = vmatpush.msra.mxu0 0.0
    %349 = vmatpush.msra.mxu0 0.0
    %350 = vmatpush.msra.mxu0 0.0
    %351 = vmatpush.msra.mxu0 0.0
    %352 = vmatpush.msra.mxu0 0.0
    %353 = vmatpush.msra.mxu0 0.0
    %354 = vmatpush.msra.mxu0 0.0
    %355 = vmatpush.msra.mxu0 0.0
    %356 = vmatpush.msra.mxu0 0.0
    %357 = vmatpush.msra.mxu0 %v339
    %358 = vmatpush.msra.mxu0 %v338
    %359 = vmatpush.msra.mxu0 %v337
    %360 = vmatpush.msra.mxu0 %v336
    %361 = vmatmul.f32.gmra.mxu0 %v343
    %v362 = vpop.f32.mrf.mxu0
    %v363 = vadd.f32 0.0, %v362
    %364 = vdwg.mxu0
    %v365 = vadd.f32 %v334, %v363
    %v366 = vsel %vm132, %v365, %v334
    %v367 = vld [vmem:[#allocation2 + $0x148] sm:$0x1]
    %v368 = vperm.slane %v367, 0
    %v369 = vadd.f32 %v366, %v368
    %v370 = vld [vmem:[%s2] sm:$0xff]
    %v371 = vld [vmem:[%s2 + $0x8] sm:$0xff]
    %v372 = vld [vmem:[%s3] sm:$0xff]
    %v373 = vld [vmem:[%s3 + $0x8] sm:$0xff]
    %376 = vrot.lane.b32.xlu0 %v372, 4
    %v377 = vpop.permute.xlu0 %376
    %378 = vrot.lane.b32.xlu0 %v373, 4
    %v379 = vpop.permute.xlu0 %378
    %vm382 = vcmask 31744
    %v383 = vsel %vm382, %v370, %v377
    %v384 = vsel %vm382, %v371, %v379
    %v385 = vld [vmem:[#allocation2 + $0xe0] sm:$0xff]
    %v386 = vld [vmem:[#allocation2 + $0xe8] sm:$0xff]
    %v387 = vld [vmem:[#allocation2 + $0xf0] sm:$0xf]
    %vm388 = vcmask 162816
    %v390 = vsel %vm388, %v383, 0
    %v393 = vsel %vm388, %v384, 0
    %vm395 = vcmask 1043456
    %v397 = vsel %vm395, %v387, 0
    %399 = vmatpush.msra.mxu0 0.0
    %400 = vmatpush.msra.mxu0 0.0
    %401 = vmatpush.msra.mxu0 0.0
    %402 = vmatpush.msra.mxu0 0.0
    %403 = vmatpush.msra.mxu0 0.0
    %404 = vmatpush.msra.mxu0 0.0
    %405 = vmatpush.msra.mxu0 0.0
    %406 = vmatpush.msra.mxu0 0.0
    %407 = vmatpush.msra.mxu0 0.0
    %408 = vmatpush.msra.mxu0 0.0
    %409 = vmatpush.msra.mxu0 0.0
    %410 = vmatpush.msra.mxu0 0.0
    %411 = vmatpush.msra.mxu0 0.0
    %412 = vmatpush.msra.mxu0 %v397
    %413 = vmatpush.msra.mxu0 %v386
    %414 = vmatpush.msra.mxu0 %v385
    %415 = vmatmul.f32.gmra.mxu0 %v390
    %v416 = vpop.f32.mrf.mxu0
    %v417 = vadd.f32 0.0, %v416
    %418 = vmatmul.f32.gmra.mxu0 %v393
    %v419 = vpop.f32.mrf.mxu0
    %v420 = vadd.f32 0.0, %v419
    %421 = vdwg.mxu0
    %v423 = vrot.slane %v369, 1
    %v424 = vperm.slane %v369, 0
    %v425 = vperm.slane %v423, 0
    %v428 = vadd.f32 %v424, %v417
    %v429 = vadd.f32 %v425, %v420
    %v430 = vmax.f32 %v428, 0.0
    %v431 = vmax.f32 %v429, 0.0
    %v432 = vld [vmem:[#allocation2 + $0xf8] sm:$0xff]
    %v433 = vld [vmem:[#allocation2 + $0x100] sm:$0xff]
    %v434 = vld [vmem:[#allocation2 + $0x108] sm:$0xff]
    %v435 = vld [vmem:[#allocation2 + $0x110] sm:$0xff]
    %v436 = vld [vmem:[#allocation2 + $0x118] sm:$0xff]
    %v437 = vld [vmem:[#allocation2 + $0x120] sm:$0xff]
    %v438 = vld [vmem:[#allocation2 + $0x128] sm:$0xff]
    %v439 = vld [vmem:[#allocation2 + $0x130] sm:$0xff]
    %v440 = vld [vmem:[#allocation2 + $0x150] sm:$0x1]
    %v441 = vperm.slane %v440, 0
    %v443 = vsel %vm192, %v430, 0
    %v446 = vsel %vm192, %v431, 0
    %448 = vmatpush.msra.mxu0 0.0
    %449 = vmatpush.msra.mxu0 0.0
    %450 = vmatpush.msra.mxu0 0.0
    %451 = vmatpush.msra.mxu0 0.0
    %452 = vmatpush.msra.mxu0 0.0
    %453 = vmatpush.msra.mxu0 0.0
    %454 = vmatpush.msra.mxu0 0.0
    %455 = vmatpush.msra.mxu0 0.0
    %456 = vmatpush.msra.mxu0 %v439
    %457 = vmatpush.msra.mxu0 %v438
    %458 = vmatpush.msra.mxu0 %v437
    %459 = vmatpush.msra.mxu0 %v436
    %460 = vmatpush.msra.mxu0 %v435
    %461 = vmatpush.msra.mxu0 %v434
    %462 = vmatpush.msra.mxu0 %v433
    %463 = vmatpush.msra.mxu0 %v432
    %464 = vmatmul.f32.gmra.mxu0 %v443
    %v465 = vpop.f32.mrf.mxu0
    %v466 = vadd.f32 %v441, %v465
    %467 = vmatmul.f32.gmra.mxu0 %v446
    %v468 = vpop.f32.mrf.mxu0
    %v469 = vadd.f32 %v441, %v468
    %470 = vdwg.mxu0
    %v471 = vsel %vm132, %v177, %v310
    %vm472 = vcmask 1041408
    %v473 = vsel %vm472, %v471, 0.0
    %476 = vrot.lane.b32.xlu0 %v473, 32
    %v477 = vpop.permute.xlu0 %476
    %478 = vrot.lane.b32.xlu0 0.0, 32
    %v479 = vpop.permute.xlu0 %478
    %vm482 = vcmask 138240
    %v483 = vsel %vm482, %v466, 0.0
    %v484 = vsel %vm482, %v469, 0.0
    %v485 = vsel %vm132, %v483, %v477
    %v486 = vsel %vm132, %v484, %v479
    %vm487 = vcmask 785408
    %v488 = vsel %vm487, %v485, 0.0
    %v489 = vsel %vm487, %v486, 0.0
    %490 = vst [vmem:[%s5] sm:$0xff] %v488
    %491 = vst [vmem:[%s5 + $0x8] sm:$0xff] %v489
    // Predicated region
    $region26: #{dpf_forward.3} parent=1 // pred_check
      _
    $region27: #{dpf_forward.3} parent=1 // pred_check_branch
      %493 = sbr.rel (0) target = $region29
    $region28: #{dpf_forward.3} parent=1 // pred_region
      _
    $region29: #{dpf_forward.3} parent=1 // pred_fallthru
      _
    // Predicated region
    $region30: #{dpf_forward.3} parent=1 // pred_check
      _
    $region31: #{dpf_forward.3} parent=1 // pred_check_branch
      %495 = sbr.rel (0) target = $region33
    $region32: #{dpf_forward.3} parent=1 // pred_region
      _
    $region33: #{dpf_forward.3} parent=1 // pred_fallthru
      _
    %496 = vsyncpa [#allocation3], 1

</llo_original>
